<compile_context>
chip_gen: v5e
topology: v5e:2x2
jax: 0.10.0
libtpu: 0.0.40
codegen_flags: <defaults>
</compile_context>

<pallas_src>
import functools

import jax
import jax.numpy as jnp
from jax import lax
from jax.experimental import pallas as pl
from jax.experimental.pallas import tpu as pltpu

LN_EPS = 1e-5  # PyTorch nn.LayerNorm default


def _layernorm(x, gamma, beta):
    mu = jnp.mean(x, axis=-1, keepdims=True)
    xc = x - mu
    var = jnp.mean(xc * xc, axis=-1, keepdims=True)
    return xc * lax.rsqrt(var + LN_EPS) * gamma + beta


def _make_critic_kernel(use_bf16_matmul):
    mm_dtype = jnp.bfloat16 if use_bf16_matmul else jnp.float32

    def critic_kernel(
        state_ref, action_ref,
        w1_ref, b1_ref, g1_ref, be1_ref,
        w2s_ref, w2a_ref, b2_ref, g2_ref, be2_ref,
        w3_ref, b3_ref,
        q_ref,
    ):
        state = state_ref[...].astype(mm_dtype)
        action = action_ref[...].astype(mm_dtype)

        # fc1 + LayerNorm + ReLU  (LN / ReLU always f32)
        h1 = jnp.dot(state, w1_ref[...].astype(mm_dtype),
                     preferred_element_type=jnp.float32) + b1_ref[...]
        h1 = jnp.maximum(_layernorm(h1, g1_ref[...], be1_ref[...]), 0.0)

        # fc2 on concat([h1, action], dim=1) == h1 @ W2_state + action @ W2_action
        h2 = (
            jnp.dot(h1.astype(mm_dtype), w2s_ref[...].astype(mm_dtype),
                    preferred_element_type=jnp.float32)
            + jnp.dot(action, w2a_ref[...].astype(mm_dtype),
                      preferred_element_type=jnp.float32)
            + b2_ref[...]
        )
        h2 = jnp.maximum(_layernorm(h2, g2_ref[...], be2_ref[...]), 0.0)

        # fc3: contract w3 (1, h2_dim) against h2 (tile, h2_dim) over the feature
        # axis -> (1, tile).  Result is produced batch-on-lanes, so the store is a
        # full-width vst rather than a masked 1-lane store.
        q = lax.dot_general(
            w3_ref[...], h2,
            dimension_numbers=(((1,), (1,)), ((), ())),
            preferred_element_type=jnp.float32,
        )
        q_ref[...] = q + b3_ref[0, 0]   # b3 scalar read from SMEM

    return critic_kernel


@functools.partial(jax.jit, static_argnames=("batch_tile", "use_bf16_matmul"))
def critic_forward(state, action, params, *, batch_tile=256, use_bf16_matmul=True):
    B, obs_dim = state.shape
    act_dim = action.shape[1]
    h1_dim = params["w1"].shape[1]
    h2_dim = params["w2s"].shape[1]

    # --- batch tiling: large tiles; pad the remainder instead of asserting -----
    if B <= batch_tile:
        tile = B                      # whole batch in a single grid step
    else:
        tile = batch_tile
        assert tile % 128 == 0, "batch_tile must be a multiple of 128 when B > batch_tile"
    num_tiles = pl.cdiv(B, tile)
    b_pad = num_tiles * tile
    if b_pad != B:
        state = jnp.pad(state, ((0, b_pad - B), (0, 0)))
        action = jnp.pad(action, ((0, b_pad - B), (0, 0)))

    # Weights / per-feature vectors: constant index_map -> one block, resident in
    # VMEM across all grid steps.
    def wspec(shape):
        return pl.BlockSpec(shape, lambda i: (0, 0))

    kernel = _make_critic_kernel(use_bf16_matmul)

    q_row = pl.pallas_call(
        kernel,
        out_shape=jax.ShapeDtypeStruct((1, b_pad), jnp.float32),
        grid_spec=pltpu.PrefetchScalarGridSpec(
            num_scalar_prefetch=0,
            grid=(num_tiles,),
            in_specs=[
                pl.BlockSpec((tile, obs_dim), lambda i: (i, 0)),   # state
                pl.BlockSpec((tile, act_dim), lambda i: (i, 0)),   # action
                wspec((obs_dim, h1_dim)),        # w1
                wspec((1, h1_dim)),              # b1
                wspec((1, h1_dim)),              # ln1 gamma
                wspec((1, h1_dim)),              # ln1 beta
                wspec((h1_dim, h2_dim)),         # w2 (state part)
                wspec((act_dim, h2_dim)),        # w2 (action part)
                wspec((1, h2_dim)),              # b2
                wspec((1, h2_dim)),              # ln2 gamma
                wspec((1, h2_dim)),              # ln2 beta
                wspec((1, h2_dim)),              # w3 as a row
                pl.BlockSpec(memory_space=pltpu.MemorySpace.SMEM),  # b3 scalar
            ],
            # lane-dense output: one (1, tile) row per grid step
            out_specs=pl.BlockSpec((1, tile), lambda i: (0, i)),
        ),
        compiler_params=pltpu.CompilerParams(
            dimension_semantics=("parallel",),          # megacore batch sharding
            vmem_limit_bytes=32 * 1024 * 1024,          # explicit; tiny footprint anyway
        ),
    )(
        state, action,
        params["w1"], params["b1"], params["g1"], params["be1"],
        params["w2s"], params["w2a"], params["b2"], params["g2"], params["be2"],
        params["w3"], params["b3"],
    )
    return q_row[0, :B].reshape(B, 1)


def init_params(key, obs_dim, act_dim, h1_dim, h2_dim):
    """Deterministic synthetic init (fan-in uniform, like the PyTorch init_weights helper)."""
    ks = jax.random.split(key, 6)

    def uniform(k, shape, fan_in, scale=None):
        lim = scale if scale is not None else 1.0 / jnp.sqrt(fan_in)
        return jax.random.uniform(k, shape, jnp.float32, -lim, lim)

    # fc1: obs -> h1
    w1 = uniform(ks[0], (obs_dim, h1_dim), obs_dim)
    b1 = uniform(ks[1], (1, h1_dim), obs_dim)
    # fc2: (h1 + act) -> h2   (split into state / action parts)
    fan2 = h1_dim + act_dim
    w2 = uniform(ks[2], (fan2, h2_dim), fan2)
    b2 = uniform(ks[3], (1, h2_dim), fan2)
    w2s, w2a = w2[:h1_dim], w2[h1_dim:]
    # fc3: h2 -> 1, small "last layer" init (3e-3 like standard DDPG).
    # Stored as a ROW (1, h2_dim) so the kernel can contract it lane-densely.
    w3 = uniform(ks[4], (1, h2_dim), h2_dim, scale=3e-3)
    b3 = uniform(ks[5], (1, 1), h2_dim, scale=3e-3)

    return {
        "w1": w1, "b1": b1,
        "g1": jnp.ones((1, h1_dim), jnp.float32), "be1": jnp.zeros((1, h1_dim), jnp.float32),
        "w2s": w2s, "w2a": w2a, "b2": b2,
        "g2": jnp.ones((1, h2_dim), jnp.float32), "be2": jnp.zeros((1, h2_dim), jnp.float32),
        "w3": w3, "b3": b3,
    }


def critic_ref(state, action, p):
    """Pure-JAX reference (mirrors the PyTorch forward) for sanity checking."""
    h1 = state @ p["w1"] + p["b1"]
    h1 = jnp.maximum(_layernorm(h1, p["g1"], p["be1"]), 0.0)
    h2 = h1 @ p["w2s"] + action @ p["w2a"] + p["b2"]
    h2 = jnp.maximum(_layernorm(h2, p["g2"], p["be2"]), 0.0)
    return h2 @ p["w3"].T + p["b3"]


if __name__ == "__main__":
    OBS_DIM, ACT_DIM = 16, 4
    H1_DIM, H2_DIM = 32, 64

    key = jax.random.PRNGKey(0)
    k_s1, k_a1, k_s2, k_a2, k_p = jax.random.split(key, 5)
    params = init_params(k_p, OBS_DIM, ACT_DIM, H1_DIM, H2_DIM)

    # Case 1: tiny batch -> single grid step, exact f32 path.
    B1 = 8
    state1 = jax.random.normal(k_s1, (B1, OBS_DIM), jnp.float32)
    action1 = jax.random.normal(k_a1, (B1, ACT_DIM), jnp.float32)
    q1 = critic_forward(state1, action1, params, use_bf16_matmul=False)
    jax.block_until_ready(q1)
    q1_ref = critic_ref(state1, action1, params)
    assert q1.shape == (B1, 1)
    assert jnp.allclose(q1, q1_ref, atol=1e-4, rtol=1e-4), "f32 single-tile mismatch"

    # Case 2: non-divisible batch -> multi-tile grid with padding (136 -> 2x128), f32 path.
    B2 = 136
    state2 = jax.random.normal(k_s2, (B2, OBS_DIM), jnp.float32)
    action2 = jax.random.normal(k_a2, (B2, ACT_DIM), jnp.float32)
    q2 = critic_forward(state2, action2, params, batch_tile=128, use_bf16_matmul=False)
    jax.block_until_ready(q2)
    q2_ref = critic_ref(state2, action2, params)
    assert q2.shape == (B2, 1)
    assert jnp.allclose(q2, q2_ref, atol=1e-4, rtol=1e-4), "f32 multi-tile mismatch"

    # Case 3: bf16-matmul fast path (default on v6e/v7x) — loose tolerance vs f32 reference.
    q3 = critic_forward(state2, action2, params, batch_tile=128, use_bf16_matmul=True)
    jax.block_until_ready(q3)
    assert jnp.allclose(q3, q2_ref, atol=5e-2, rtol=5e-2), "bf16 path mismatch"

    print("KERNEL_OK")
</pallas_src>

<mosaic_0001>
module attributes {stable_mosaic.version = 11 : i64} {
  func.func @critic_kernel(%arg0: i32, %arg1: memref<8x16xf32, #tpu.memory_space<vmem>>, %arg2: memref<8x4xf32, #tpu.memory_space<vmem>>, %arg3: memref<16x32xf32, #tpu.memory_space<vmem>>, %arg4: memref<1x32xf32, #tpu.memory_space<vmem>>, %arg5: memref<1x32xf32, #tpu.memory_space<vmem>>, %arg6: memref<1x32xf32, #tpu.memory_space<vmem>>, %arg7: memref<32x64xf32, #tpu.memory_space<vmem>>, %arg8: memref<4x64xf32, #tpu.memory_space<vmem>>, %arg9: memref<1x64xf32, #tpu.memory_space<vmem>>, %arg10: memref<1x64xf32, #tpu.memory_space<vmem>>, %arg11: memref<1x64xf32, #tpu.memory_space<vmem>>, %arg12: memref<1x64xf32, #tpu.memory_space<vmem>>, %arg13: memref<1x1xf32, #tpu.memory_space<smem>>, %arg14: memref<1x8xf32, #tpu.memory_space<vmem>>) attributes {dimension_semantics = [#tpu.dimension_semantics<parallel>], iteration_bounds = array<i64: 1>, scalar_prefetch = 0 : i64, scratch_operands = 0 : i64, tpu.core_type = #tpu.core_type<tc>, window_params = [{transform_indices = @transform_0, window_bounds = array<i64: 8, 16>}, {transform_indices = @transform_1, window_bounds = array<i64: 8, 4>}, {pipeline_mode = #tpu.pipeline_mode<synchronous>, transform_indices = @transform_2, window_bounds = array<i64: 16, 32>}, {pipeline_mode = #tpu.pipeline_mode<synchronous>, transform_indices = @transform_3, window_bounds = array<i64: 1, 32>}, {pipeline_mode = #tpu.pipeline_mode<synchronous>, transform_indices = @transform_4, window_bounds = array<i64: 1, 32>}, {pipeline_mode = #tpu.pipeline_mode<synchronous>, transform_indices = @transform_5, window_bounds = array<i64: 1, 32>}, {pipeline_mode = #tpu.pipeline_mode<synchronous>, transform_indices = @transform_6, window_bounds = array<i64: 32, 64>}, {pipeline_mode = #tpu.pipeline_mode<synchronous>, transform_indices = @transform_7, window_bounds = array<i64: 4, 64>}, {pipeline_mode = #tpu.pipeline_mode<synchronous>, transform_indices = @transform_8, window_bounds = array<i64: 1, 64>}, {pipeline_mode = #tpu.pipeline_mode<synchronous>, transform_indices = @transform_9, window_bounds = array<i64: 1, 64>}, {pipeline_mode = #tpu.pipeline_mode<synchronous>, transform_indices = @transform_10, window_bounds = array<i64: 1, 64>}, {pipeline_mode = #tpu.pipeline_mode<synchronous>, transform_indices = @transform_11, window_bounds = array<i64: 1, 64>}, {transform_indices = @transform_12, window_bounds = array<i64: 1, 1>}, {transform_indices = @transform_13, window_bounds = array<i64: 1, 8>}]} {
    %c0 = arith.constant 0 : index
    %c0_0 = arith.constant 0 : index
    %0 = vector.load %arg1[%c0, %c0_0] : memref<8x16xf32, #tpu.memory_space<vmem>>, vector<8x16xf32>
    %c0_1 = arith.constant 0 : index
    %c0_2 = arith.constant 0 : index
    %1 = vector.load %arg2[%c0_1, %c0_2] : memref<8x4xf32, #tpu.memory_space<vmem>>, vector<8x4xf32>
    %c0_3 = arith.constant 0 : index
    %c0_4 = arith.constant 0 : index
    %2 = vector.load %arg3[%c0_3, %c0_4] : memref<16x32xf32, #tpu.memory_space<vmem>>, vector<16x32xf32>
    %cst = arith.constant dense<0.000000e+00> : vector<8x32xf32>
    %3 = tpu.matmul %0, %2, %cst {dimension_numbers = #tpu.dot_dimension_numbers<[1], [0], [0], [1], [0, 0, 1, 1], [], []>} : vector<8x16xf32>, vector<16x32xf32>, vector<8x32xf32> -> vector<8x32xf32>
    %c0_5 = arith.constant 0 : index
    %c0_6 = arith.constant 0 : index
    %4 = vector.load %arg4[%c0_5, %c0_6] : memref<1x32xf32, #tpu.memory_space<vmem>>, vector<1x32xf32>
    %5 = vector.broadcast %4 : vector<1x32xf32> to vector<8x32xf32>
    %6 = arith.addf %3, %5 : vector<8x32xf32>
    %c0_7 = arith.constant 0 : index
    %c0_8 = arith.constant 0 : index
    %7 = vector.load %arg5[%c0_7, %c0_8] : memref<1x32xf32, #tpu.memory_space<vmem>>, vector<1x32xf32>
    %c0_9 = arith.constant 0 : index
    %c0_10 = arith.constant 0 : index
    %8 = vector.load %arg6[%c0_9, %c0_10] : memref<1x32xf32, #tpu.memory_space<vmem>>, vector<1x32xf32>
    %cst_11 = arith.constant dense<0.000000e+00> : vector<8xf32>
    %9 = vector.multi_reduction <add>, %6, %cst_11 [1] : vector<8x32xf32> to vector<8xf32>
    %10 = vector.shape_cast %9 : vector<8xf32> to vector<8x1xf32>
    %cst_12 = arith.constant 3.200000e+01 : f32
    %11 = vector.broadcast %cst_12 : f32 to vector<8x1xf32>
    %12 = arith.divf %10, %11 : vector<8x1xf32>
    %13 = vector.broadcast %12 : vector<8x1xf32> to vector<8x32xf32>
    %14 = arith.subf %6, %13 : vector<8x32xf32>
    %15 = arith.mulf %14, %14 : vector<8x32xf32>
    %cst_13 = arith.constant dense<0.000000e+00> : vector<8xf32>
    %16 = vector.multi_reduction <add>, %15, %cst_13 [1] : vector<8x32xf32> to vector<8xf32>
    %17 = vector.shape_cast %16 : vector<8xf32> to vector<8x1xf32>
    %cst_14 = arith.constant 3.200000e+01 : f32
    %18 = vector.broadcast %cst_14 : f32 to vector<8x1xf32>
    %19 = arith.divf %17, %18 : vector<8x1xf32>
    %cst_15 = arith.constant 9.99999974E-6 : f32
    %20 = vector.broadcast %cst_15 : f32 to vector<8x1xf32>
    %21 = arith.addf %19, %20 : vector<8x1xf32>
    %22 = math.rsqrt %21 : vector<8x1xf32>
    %23 = vector.broadcast %22 : vector<8x1xf32> to vector<8x32xf32>
    %24 = arith.mulf %14, %23 : vector<8x32xf32>
    %25 = vector.broadcast %7 : vector<1x32xf32> to vector<8x32xf32>
    %26 = arith.mulf %24, %25 : vector<8x32xf32>
    %27 = vector.broadcast %8 : vector<1x32xf32> to vector<8x32xf32>
    %28 = arith.addf %26, %27 : vector<8x32xf32>
    %cst_16 = arith.constant 0.000000e+00 : f32
    %29 = vector.broadcast %cst_16 : f32 to vector<8x32xf32>
    %30 = arith.maximumf %28, %29 : vector<8x32xf32>
    %c0_17 = arith.constant 0 : index
    %c0_18 = arith.constant 0 : index
    %31 = vector.load %arg7[%c0_17, %c0_18] : memref<32x64xf32, #tpu.memory_space<vmem>>, vector<32x64xf32>
    %cst_19 = arith.constant dense<0.000000e+00> : vector<8x64xf32>
    %32 = tpu.matmul %30, %31, %cst_19 {dimension_numbers = #tpu.dot_dimension_numbers<[1], [0], [0], [1], [0, 0, 1, 1], [], []>} : vector<8x32xf32>, vector<32x64xf32>, vector<8x64xf32> -> vector<8x64xf32>
    %c0_20 = arith.constant 0 : index
    %c0_21 = arith.constant 0 : index
    %33 = vector.load %arg8[%c0_20, %c0_21] : memref<4x64xf32, #tpu.memory_space<vmem>>, vector<4x64xf32>
    %cst_22 = arith.constant dense<0.000000e+00> : vector<8x64xf32>
    %34 = tpu.matmul %1, %33, %cst_22 {dimension_numbers = #tpu.dot_dimension_numbers<[1], [0], [0], [1], [0, 0, 1, 1], [], []>} : vector<8x4xf32>, vector<4x64xf32>, vector<8x64xf32> -> vector<8x64xf32>
    %35 = arith.addf %32, %34 : vector<8x64xf32>
    %c0_23 = arith.constant 0 : index
    %c0_24 = arith.constant 0 : index
    %36 = vector.load %arg9[%c0_23, %c0_24] : memref<1x64xf32, #tpu.memory_space<vmem>>, vector<1x64xf32>
    %37 = vector.broadcast %36 : vector<1x64xf32> to vector<8x64xf32>
    %38 = arith.addf %35, %37 : vector<8x64xf32>
    %c0_25 = arith.constant 0 : index
    %c0_26 = arith.constant 0 : index
    %39 = vector.load %arg10[%c0_25, %c0_26] : memref<1x64xf32, #tpu.memory_space<vmem>>, vector<1x64xf32>
    %c0_27 = arith.constant 0 : index
    %c0_28 = arith.constant 0 : index
    %40 = vector.load %arg11[%c0_27, %c0_28] : memref<1x64xf32, #tpu.memory_space<vmem>>, vector<1x64xf32>
    %cst_29 = arith.constant dense<0.000000e+00> : vector<8xf32>
    %41 = vector.multi_reduction <add>, %38, %cst_29 [1] : vector<8x64xf32> to vector<8xf32>
    %42 = vector.shape_cast %41 : vector<8xf32> to vector<8x1xf32>
    %cst_30 = arith.constant 6.400000e+01 : f32
    %43 = vector.broadcast %cst_30 : f32 to vector<8x1xf32>
    %44 = arith.divf %42, %43 : vector<8x1xf32>
    %45 = vector.broadcast %44 : vector<8x1xf32> to vector<8x64xf32>
    %46 = arith.subf %38, %45 : vector<8x64xf32>
    %47 = arith.mulf %46, %46 : vector<8x64xf32>
    %cst_31 = arith.constant dense<0.000000e+00> : vector<8xf32>
    %48 = vector.multi_reduction <add>, %47, %cst_31 [1] : vector<8x64xf32> to vector<8xf32>
    %49 = vector.shape_cast %48 : vector<8xf32> to vector<8x1xf32>
    %cst_32 = arith.constant 6.400000e+01 : f32
    %50 = vector.broadcast %cst_32 : f32 to vector<8x1xf32>
    %51 = arith.divf %49, %50 : vector<8x1xf32>
    %cst_33 = arith.constant 9.99999974E-6 : f32
    %52 = vector.broadcast %cst_33 : f32 to vector<8x1xf32>
    %53 = arith.addf %51, %52 : vector<8x1xf32>
    %54 = math.rsqrt %53 : vector<8x1xf32>
    %55 = vector.broadcast %54 : vector<8x1xf32> to vector<8x64xf32>
    %56 = arith.mulf %46, %55 : vector<8x64xf32>
    %57 = vector.broadcast %39 : vector<1x64xf32> to vector<8x64xf32>
    %58 = arith.mulf %56, %57 : vector<8x64xf32>
    %59 = vector.broadcast %40 : vector<1x64xf32> to vector<8x64xf32>
    %60 = arith.addf %58, %59 : vector<8x64xf32>
    %cst_34 = arith.constant 0.000000e+00 : f32
    %61 = vector.broadcast %cst_34 : f32 to vector<8x64xf32>
    %62 = arith.maximumf %60, %61 : vector<8x64xf32>
    %c0_35 = arith.constant 0 : index
    %c0_36 = arith.constant 0 : index
    %63 = vector.load %arg12[%c0_35, %c0_36] : memref<1x64xf32, #tpu.memory_space<vmem>>, vector<1x64xf32>
    %cst_37 = arith.constant dense<0.000000e+00> : vector<1x8xf32>
    %64 = tpu.matmul %63, %62, %cst_37 {dimension_numbers = #tpu.dot_dimension_numbers<[1], [1], [0], [0], [0, 0, 1, 0], [], []>} : vector<1x64xf32>, vector<8x64xf32>, vector<1x8xf32> -> vector<1x8xf32>
    %c0_38 = arith.constant 0 : index
    %c0_39 = arith.constant 0 : index
    %65 = memref.load %arg13[%c0_38, %c0_39] : memref<1x1xf32, #tpu.memory_space<smem>>
    %66 = vector.broadcast %65 : f32 to vector<1x8xf32>
    %67 = arith.addf %64, %66 : vector<1x8xf32>
    %c0_40 = arith.constant 0 : index
    %c0_41 = arith.constant 0 : index
    %68 = vector.load %arg14[%c0_40, %c0_41] : memref<1x8xf32, #tpu.memory_space<vmem>>, vector<1x8xf32>
    tpu.vector_store %arg14[%c0_40, %c0_41], %67 {strides = array<i32>} : memref<1x8xf32, #tpu.memory_space<vmem>>, vector<1x8xf32>,
    return
  }
  func.func @transform_0(%arg0: i32) -> (i32, i32) {
    %c0_i32 = arith.constant 0 : i32
    %c0_i32_0 = arith.constant 0 : i32
    return %arg0, %c0_i32 : i32, i32
  }
  func.func @transform_1(%arg0: i32) -> (i32, i32) {
    %c0_i32 = arith.constant 0 : i32
    %c0_i32_0 = arith.constant 0 : i32
    return %arg0, %c0_i32 : i32, i32
  }
  func.func @transform_2(%arg0: i32) -> (i32, i32) {
    %c0_i32 = arith.constant 0 : i32
    %c0_i32_0 = arith.constant 0 : i32
    %c0_i32_1 = arith.constant 0 : i32
    return %c0_i32, %c0_i32_0 : i32, i32
  }
  func.func @transform_3(%arg0: i32) -> (i32, i32) {
    %c0_i32 = arith.constant 0 : i32
    %c0_i32_0 = arith.constant 0 : i32
    %c0_i32_1 = arith.constant 0 : i32
    return %c0_i32, %c0_i32_0 : i32, i32
  }
  func.func @transform_4(%arg0: i32) -> (i32, i32) {
    %c0_i32 = arith.constant 0 : i32
    %c0_i32_0 = arith.constant 0 : i32
    %c0_i32_1 = arith.constant 0 : i32
    return %c0_i32, %c0_i32_0 : i32, i32
  }
  func.func @transform_5(%arg0: i32) -> (i32, i32) {
    %c0_i32 = arith.constant 0 : i32
    %c0_i32_0 = arith.constant 0 : i32
    %c0_i32_1 = arith.constant 0 : i32
    return %c0_i32, %c0_i32_0 : i32, i32
  }
  func.func @transform_6(%arg0: i32) -> (i32, i32) {
    %c0_i32 = arith.constant 0 : i32
    %c0_i32_0 = arith.constant 0 : i32
    %c0_i32_1 = arith.constant 0 : i32
    return %c0_i32, %c0_i32_0 : i32, i32
  }
  func.func @transform_7(%arg0: i32) -> (i32, i32) {
    %c0_i32 = arith.constant 0 : i32
    %c0_i32_0 = arith.constant 0 : i32
    %c0_i32_1 = arith.constant 0 : i32
    return %c0_i32, %c0_i32_0 : i32, i32
  }
  func.func @transform_8(%arg0: i32) -> (i32, i32) {
    %c0_i32 = arith.constant 0 : i32
    %c0_i32_0 = arith.constant 0 : i32
    %c0_i32_1 = arith.constant 0 : i32
    return %c0_i32, %c0_i32_0 : i32, i32
  }
  func.func @transform_9(%arg0: i32) -> (i32, i32) {
    %c0_i32 = arith.constant 0 : i32
    %c0_i32_0 = arith.constant 0 : i32
    %c0_i32_1 = arith.constant 0 : i32
    return %c0_i32, %c0_i32_0 : i32, i32
  }
  func.func @transform_10(%arg0: i32) -> (i32, i32) {
    %c0_i32 = arith.constant 0 : i32
    %c0_i32_0 = arith.constant 0 : i32
    %c0_i32_1 = arith.constant 0 : i32
    return %c0_i32, %c0_i32_0 : i32, i32
  }
  func.func @transform_11(%arg0: i32) -> (i32, i32) {
    %c0_i32 = arith.constant 0 : i32
    %c0_i32_0 = arith.constant 0 : i32
    %c0_i32_1 = arith.constant 0 : i32
    return %c0_i32, %c0_i32_0 : i32, i32
  }
  func.func @transform_12(%arg0: i32) -> (i32, i32) {
    %c0_i32 = arith.constant 0 : i32
    %c0_i32_0 = arith.constant 0 : i32
    %c0_i32_1 = arith.constant 0 : i32
    return %c0_i32, %c0_i32_0 : i32, i32
  }
  func.func @transform_13(%arg0: i32) -> (i32, i32) {
    %c0_i32 = arith.constant 0 : i32
    %c0_i32_0 = arith.constant 0 : i32
    return %c0_i32, %arg0 : i32, i32
  }
}

</mosaic_0001>

<llo_original>
// kernel: critic_forward.1
$region0: #{critic_forward.1}
  #allocation0 [shape = 'u32[]', space=smem, size = 0x4, offset = 0x4, fixed_abs, tag = 'smem constant byte address 0x4 - core index']
  #allocation1 [shape = 'u32[72,128]{1,0:T(1,128)}', space=vmem, size = 0x9000, scoped, tag = 'internal scratch']
  #allocation2 [shape = 'f32[1,1]{1,0:T(1,128)S(6)}', space=smem, size = 0x200, scoped, tag = 'scoped memory for critic_forward.1']
  %s0 = inlined_call_operand.hbm [shape: f32[8,16], index: 0, kind: input, shape index: {}]
  %s1 = inlined_call_operand.vmem [shape: f32[8,4], index: 1, kind: input, shape index: {}]
  %s2 = inlined_call_operand.vmem [shape: f32[16,32], index: 2, kind: input, shape index: {}]
  %s3 = inlined_call_operand.vmem [shape: f32[1,32], index: 3, kind: input, shape index: {}]
  %s4 = inlined_call_operand.hbm [shape: f32[1,32], index: 4, kind: input, shape index: {}]
  %s5 = inlined_call_operand.hbm [shape: f32[1,32], index: 5, kind: input, shape index: {}]
  %s6 = inlined_call_operand.hbm [shape: f32[32,64], index: 6, kind: input, shape index: {}]
  %s7 = inlined_call_operand.vmem [shape: f32[4,64], index: 7, kind: input, shape index: {}]
  %s8 = inlined_call_operand.hbm [shape: f32[1,64], index: 8, kind: input, shape index: {}]
  %s9 = inlined_call_operand.hbm [shape: f32[1,64], index: 9, kind: input, shape index: {}]
  %s10 = inlined_call_operand.hbm [shape: f32[1,64], index: 10, kind: input, shape index: {}]
  %s11 = inlined_call_operand.vmem [shape: f32[1,64], index: 11, kind: input, shape index: {}]
  %s12 = inlined_call_operand.<no memory space> [shape: f32[1,1], index: 12, kind: input, shape index: {}]
  %s13 = inlined_call_operand.hbm [shape: f32[1,8], index: 13, kind: output, shape index: {}]
  %s14 = sld [smem:[#allocation0]]
  $region90: #{critic_forward.1} parent=0
    _
  %s16 = ssub.s32 1, %s14
  %s17 = scalar_select 0, %s16, %s14
  %18 = sst [smem:[#allocation2]] %s12
  $region1: #{critic_forward.1} parent=0
    #allocation3 [shape = 'u8[4096]{0}', space=vmem, size = 0x1000, scoped, tag = 'input window, operand 0, single buffered']
    #allocation4 [shape = 's32[1]{0}', space=sflag, size = 0x4, scoped, tag = 'scoped memory for critic_forward.1']
    #allocation5 [shape = 's32[1]{0}', space=sflag, size = 0x4, scoped, tag = 'scoped memory for critic_forward.1']
    #allocation6 [shape = 'u8[512]{0}', space=vmem, size = 0x400, scoped, tag = 'input window, operand 4, single buffered']
    #allocation7 [shape = 's32[1]{0}', space=sflag, size = 0x4, scoped, tag = 'scoped memory for critic_forward.1']
    #allocation8 [shape = 'u8[512]{0}', space=vmem, size = 0x400, scoped, tag = 'input window, operand 5, single buffered']
    #allocation9 [shape = 'u8[16384]{0}', space=vmem, size = 0x4000, scoped, tag = 'input window, operand 6, single buffered']
    #allocation10 [shape = 's32[1]{0}', space=sflag, size = 0x4, scoped, tag = 'scoped memory for critic_forward.1']
    #allocation11 [shape = 'u8[512]{0}', space=vmem, size = 0x400, scoped, tag = 'input window, operand 8, single buffered']
    #allocation12 [shape = 'u8[512]{0}', space=vmem, size = 0x400, scoped, tag = 'input window, operand 9, single buffered']
    #allocation13 [shape = 's32[1]{0}', space=sflag, size = 0x4, scoped, tag = 'scoped memory for critic_forward.1']
    #allocation14 [shape = 'u8[512]{0}', space=vmem, size = 0x400, scoped, tag = 'input window, operand 10, single buffered']
    #allocation15 [shape = 'u8[512]{0}', space=vmem, size = 0x400, scoped, tag = 'output window, operand 0, single buffered']
    %19 = vsyncpa [#allocation4], 0
    %20 = vsyncpa [#allocation7], 0
    %21 = vsyncpa [#allocation10], 0
    %22 = vsyncpa [#allocation13], 0
    %23 = vsyncpa [#allocation5], 0
    // Predicated region
    $region2: #{critic_forward.1} parent=1 // pred_check
      _
    $region3: #{critic_forward.1} parent=1 // pred_check_branch
      %25 = sbr.rel (0) target = $region5
    $region4: #{critic_forward.1} parent=1 // pred_region
      %27 = vsyncadd [#allocation4], 0
      %s29 = sshll.u32 %s0, 4
      %s30 = int_to_ptr.hbm [resolvable:$true] %s29
      %s31 = sshll.u32 [#allocation3], 4
      %s32 = int_to_ptr.vmem [resolvable:$true] %s31
      %34 = dma.hbm_to_vmem [thread:$0]  %s30, 128, %s32, [#allocation4]
    $region5: #{critic_forward.1} parent=1 // pred_fallthru
      _
    // Predicated region
    $region6: #{critic_forward.1} parent=1 // pred_check
      _
    $region7: #{critic_forward.1} parent=1 // pred_check_branch
      %36 = sbr.rel (0) target = $region9
    $region8: #{critic_forward.1} parent=1 // pred_region
      _
    $region9: #{critic_forward.1} parent=1 // pred_fallthru
      _
    // Predicated region
    $region10: #{critic_forward.1} parent=1 // pred_check
      _
    $region11: #{critic_forward.1} parent=1 // pred_check_branch
      %38 = sbr.rel (0) target = $region13
    $region12: #{critic_forward.1} parent=1 // pred_region
      _
    $region13: #{critic_forward.1} parent=1 // pred_fallthru
      _
    // Predicated region
    $region14: #{critic_forward.1} parent=1 // pred_check
      _
    $region15: #{critic_forward.1} parent=1 // pred_check_branch
      %40 = sbr.rel (0) target = $region17
    $region16: #{critic_forward.1} parent=1 // pred_region
      _
    $region17: #{critic_forward.1} parent=1 // pred_fallthru
      _
    // Predicated region
    $region18: #{critic_forward.1} parent=1 // pred_check
      _
    $region19: #{critic_forward.1} parent=1 // pred_check_branch
      %42 = sbr.rel (0) target = $region21
    $region20: #{critic_forward.1} parent=1 // pred_region
      %44 = vsyncadd [#allocation7], 0
      %s46 = sshll.u32 %s4, 4
      %s47 = int_to_ptr.hbm [resolvable:$true] %s46
      %s48 = sshll.u32 [#allocation6], 4
      %s49 = int_to_ptr.vmem [resolvable:$true] %s48
      %51 = dma.hbm_to_vmem [thread:$0]  %s47, 16, %s49, [#allocation7]
    $region21: #{critic_forward.1} parent=1 // pred_fallthru
      _
    // Predicated region
    $region22: #{critic_forward.1} parent=1 // pred_check
      _
    $region23: #{critic_forward.1} parent=1 // pred_check_branch
      %53 = sbr.rel (0) target = $region25
    $region24: #{critic_forward.1} parent=1 // pred_region
      %55 = vsyncadd [#allocation7], 0
      %s57 = sshll.u32 %s5, 4
      %s58 = int_to_ptr.hbm [resolvable:$true] %s57
      %s59 = sshll.u32 [#allocation8], 4
      %s60 = int_to_ptr.vmem [resolvable:$true] %s59
      %62 = dma.hbm_to_vmem [thread:$0]  %s58, 16, %s60, [#allocation7]
    $region25: #{critic_forward.1} parent=1 // pred_fallthru
      _
    // Predicated region
    $region26: #{critic_forward.1} parent=1 // pred_check
      _
    $region27: #{critic_forward.1} parent=1 // pred_check_branch
      %64 = sbr.rel (0) target = $region29
    $region28: #{critic_forward.1} parent=1 // pred_region
      %66 = vsyncadd [#allocation10], 0
      %s67 = sshll.u32 %s6, 4
      %s68 = int_to_ptr.hbm [resolvable:$true] %s67
      %s69 = sshll.u32 [#allocation9], 4
      %s70 = int_to_ptr.vmem [resolvable:$true] %s69
      %75 = dma.hbm_to_vmem [thread:$0]  %s68, 512, %s70, [#allocation10], 128, 128, 8
    $region29: #{critic_forward.1} parent=1 // pred_fallthru
      _
    // Predicated region
    $region30: #{critic_forward.1} parent=1 // pred_check
      _
    $region31: #{critic_forward.1} parent=1 // pred_check_branch
      %77 = sbr.rel (0) target = $region33
    $region32: #{critic_forward.1} parent=1 // pred_region
      _
    $region33: #{critic_forward.1} parent=1 // pred_fallthru
      _
    // Predicated region
    $region34: #{critic_forward.1} parent=1 // pred_check
      _
    $region35: #{critic_forward.1} parent=1 // pred_check_branch
      %79 = sbr.rel (0) target = $region37
    $region36: #{critic_forward.1} parent=1 // pred_region
      %81 = vsyncadd [#allocation10], 0
      %s83 = sshll.u32 %s8, 4
      %s84 = int_to_ptr.hbm [resolvable:$true] %s83
      %s85 = sshll.u32 [#allocation11], 4
      %s86 = int_to_ptr.vmem [resolvable:$true] %s85
      %88 = dma.hbm_to_vmem [thread:$0]  %s84, 16, %s86, [#allocation10]
    $region37: #{critic_forward.1} parent=1 // pred_fallthru
      _
    // Predicated region
    $region38: #{critic_forward.1} parent=1 // pred_check
      _
    $region39: #{critic_forward.1} parent=1 // pred_check_branch
      %90 = sbr.rel (0) target = $region41
    $region40: #{critic_forward.1} parent=1 // pred_region
      %92 = vsyncadd [#allocation13], 0
      %s94 = sshll.u32 %s9, 4
      %s95 = int_to_ptr.hbm [resolvable:$true] %s94
      %s96 = sshll.u32 [#allocation12], 4
      %s97 = int_to_ptr.vmem [resolvable:$true] %s96
      %99 = dma.hbm_to_vmem [thread:$0]  %s95, 16, %s97, [#allocation13]
    $region41: #{critic_forward.1} parent=1 // pred_fallthru
      _
    // Predicated region
    $region42: #{critic_forward.1} parent=1 // pred_check
      _
    $region43: #{critic_forward.1} parent=1 // pred_check_branch
      %101 = sbr.rel (0) target = $region45
    $region44: #{critic_forward.1} parent=1 // pred_region
      %103 = vsyncadd [#allocation13], 0
      %s105 = sshll.u32 %s10, 4
      %s106 = int_to_ptr.hbm [resolvable:$true] %s105
      %s107 = sshll.u32 [#allocation14], 4
      %s108 = int_to_ptr.vmem [resolvable:$true] %s107
      %110 = dma.hbm_to_vmem [thread:$0]  %s106, 16, %s108, [#allocation13]
    $region45: #{critic_forward.1} parent=1 // pred_fallthru
      _
    // Predicated region
    $region46: #{critic_forward.1} parent=1 // pred_check
      _
    $region47: #{critic_forward.1} parent=1 // pred_check_branch
      %112 = sbr.rel (0) target = $region49
    $region48: #{critic_forward.1} parent=1 // pred_region
      _
    $region49: #{critic_forward.1} parent=1 // pred_fallthru
      _
    // Predicated region
    $region50: #{critic_forward.1} parent=1 // pred_check
      _
    $region51: #{critic_forward.1} parent=1 // pred_check_branch
      %114 = sbr.rel (0) target = $region53
    $region52: #{critic_forward.1} parent=1 // pred_region
      _
    $region53: #{critic_forward.1} parent=1 // pred_fallthru
      _
    // Predicated region
    $region54: #{critic_forward.1} parent=1 // pred_check
      _
    $region55: #{critic_forward.1} parent=1 // pred_check_branch
      %116 = sbr.rel (0) target = $region57
    $region56: #{critic_forward.1} parent=1 // pred_region
      %118 = dma.done [#allocation4], 128
    $region57: #{critic_forward.1} parent=1 // pred_fallthru
      _
    // Predicated region
    $region58: #{critic_forward.1} parent=1 // pred_check
      _
    $region59: #{critic_forward.1} parent=1 // pred_check_branch
      %120 = sbr.rel (0) target = $region61
    $region60: #{critic_forward.1} parent=1 // pred_region
      %122 = dma.done [#allocation7], 16
    $region61: #{critic_forward.1} parent=1 // pred_fallthru
      _
    // Predicated region
    $region62: #{critic_forward.1} parent=1 // pred_check
      _
    $region63: #{critic_forward.1} parent=1 // pred_check_branch
      %124 = sbr.rel (0) target = $region65
    $region64: #{critic_forward.1} parent=1 // pred_region
      %126 = dma.done [#allocation7], 16
    $region65: #{critic_forward.1} parent=1 // pred_fallthru
      _
    // Predicated region
    $region66: #{critic_forward.1} parent=1 // pred_check
      _
    $region67: #{critic_forward.1} parent=1 // pred_check_branch
      %128 = sbr.rel (0) target = $region69
    $region68: #{critic_forward.1} parent=1 // pred_region
      %130 = dma.done [#allocation10], 512
    $region69: #{critic_forward.1} parent=1 // pred_fallthru
      _
    // Predicated region
    $region70: #{critic_forward.1} parent=1 // pred_check
      _
    $region71: #{critic_forward.1} parent=1 // pred_check_branch
      %132 = sbr.rel (0) target = $region73
    $region72: #{critic_forward.1} parent=1 // pred_region
      %134 = dma.done [#allocation10], 16
    $region73: #{critic_forward.1} parent=1 // pred_fallthru
      _
    // Predicated region
    $region74: #{critic_forward.1} parent=1 // pred_check
      _
    $region75: #{critic_forward.1} parent=1 // pred_check_branch
      %136 = sbr.rel (0) target = $region77
    $region76: #{critic_forward.1} parent=1 // pred_region
      %138 = dma.done [#allocation13], 16
    $region77: #{critic_forward.1} parent=1 // pred_fallthru
      _
    // Predicated region
    $region78: #{critic_forward.1} parent=1 // pred_check
      _
    $region79: #{critic_forward.1} parent=1 // pred_check_branch
      %140 = sbr.rel (0) target = $region81
    $region80: #{critic_forward.1} parent=1 // pred_region
      %142 = dma.done [#allocation13], 16
    $region81: #{critic_forward.1} parent=1 // pred_fallthru
      _
    %v143 = vld [vmem:[#allocation3] sm:$0xff]
    %v144 = vld [vmem:[%s1] sm:$0xff]
    %v145 = vld [vmem:[%s2] sm:$0xff]
    %v146 = vld [vmem:[%s2 + $0x8] sm:$0xff]
    %v147 = vld [vmem:[%s3] sm:$0x1]
    %v149 = vperm.slane %v147, 0
    %vm151 = vcmask 130048
    %v153 = vsel %vm151, %v143, 0
    %155 = vmatpush.msra.mxu0 0.0
    %156 = vmatpush.msra.mxu0 0.0
    %157 = vmatpush.msra.mxu0 0.0
    %158 = vmatpush.msra.mxu0 0.0
    %159 = vmatpush.msra.mxu0 0.0
    %160 = vmatpush.msra.mxu0 0.0
    %161 = vmatpush.msra.mxu0 0.0
    %162 = vmatpush.msra.mxu0 0.0
    %163 = vmatpush.msra.mxu0 0.0
    %164 = vmatpush.msra.mxu0 0.0
    %165 = vmatpush.msra.mxu0 0.0
    %166 = vmatpush.msra.mxu0 0.0
    %167 = vmatpush.msra.mxu0 0.0
    %168 = vmatpush.msra.mxu0 0.0
    %169 = vmatpush.msra.mxu0 %v146
    %170 = vmatpush.msra.mxu0 %v145
    %171 = vmatmul.f32.gmra.mxu0 %v153
    %v172 = vpop.f32.mrf.mxu0
    %v173 = vadd.f32 %v149, %v172
    %174 = vdwg.mxu0
    %v175 = vld [vmem:[#allocation6] sm:$0x1]
    %v176 = vld [vmem:[#allocation8] sm:$0x1]
    %vm177 = vcmask 261120
    %v178 = vsel %vm177, %v173, 0.0
    %179 = vadd.xlane.f32.xlu0 %v178
    %v180 = vpop.xlane.xlu0 %179
    %v181 = vrcp.pop 32.0
    %v182 = vmul.f32 32.0, %v181
    %v183 = vsub.f32 1.0, %v182
    %v184 = vmul.f32 %v181, %v183
    %v185 = vadd.f32 %v181, %v184
    %vm186 = vweird.f32 %v181
    %v187 = vsel %vm186, %v181, %v185
    %v188 = vmul.f32 %v180, %v187
    %v189 = vsub.f32 %v173, %v188
    %v190 = vmul.f32 %v189, %v189
    %v191 = vsel %vm177, %v190, 0.0
    %192 = vadd.xlane.f32.xlu0 %v191
    %v193 = vpop.xlane.xlu0 %192
    %v194 = vmul.f32 %v193, %v187
    %v195 = vadd.f32 %v194, 1e-05
    %v196 = vrsqrt.pop %v195
    %v197 = vmul.f32 %v196, %v195
    %v198 = vmul.f32 %v197, %v196
    %v199 = vmul.f32 0.5, %v198
    %v200 = vsub.f32 1.5, %v199
    %v201 = vmul.f32 %v196, %v200
    %vm202 = vweird.f32 %v195
    %vm203 = vweird.f32 %v196
    %vm204 = vmor %vm202, %vm203
    %v205 = vsel %vm204, %v196, %v201
    %v206 = vmul.f32 %v189, %v205
    %v208 = vperm.slane %v175, 0
    %v210 = vmul.f32 %v206, %v208
    %v212 = vperm.slane %v176, 0
    %v214 = vadd.f32 %v210, %v212
    %v215 = vmax.f32 %v214, 0.0
    %v216 = vld [vmem:[#allocation9] sm:$0xff]
    %v217 = vld [vmem:[#allocation9 + $0x8] sm:$0xff]
    %v218 = vld [vmem:[#allocation9 + $0x10] sm:$0xff]
    %v219 = vld [vmem:[#allocation9 + $0x18] sm:$0xff]
    %v220 = vld [vmem:[%s7] sm:$0xf]
    %vm221 = vcmask 31744
    %v223 = vsel %vm221, %v144, 0
    %vm225 = vcmask 1043456
    %v227 = vsel %vm225, %v220, 0
    %229 = vmatpush.msra.mxu0 0.0
    %230 = vmatpush.msra.mxu0 0.0
    %231 = vmatpush.msra.mxu0 0.0
    %232 = vmatpush.msra.mxu0 0.0
    %233 = vmatpush.msra.mxu0 0.0
    %234 = vmatpush.msra.mxu0 0.0
    %235 = vmatpush.msra.mxu0 0.0
    %236 = vmatpush.msra.mxu0 0.0
    %237 = vmatpush.msra.mxu0 0.0
    %238 = vmatpush.msra.mxu0 0.0
    %239 = vmatpush.msra.mxu0 0.0
    %240 = vmatpush.msra.mxu0 0.0
    %241 = vmatpush.msra.mxu0 0.0
    %242 = vmatpush.msra.mxu0 0.0
    %243 = vmatpush.msra.mxu0 0.0
    %244 = vmatpush.msra.mxu0 %v227
    %245 = vmatmul.f32.gmra.mxu0 %v223
    %v246 = vpop.f32.mrf.mxu0
    %v247 = vadd.f32 0.0, %v246
    %248 = vdwg.mxu0
    %v250 = vsel %vm177, %v215, 0
    %252 = vmatpush.msra.mxu0 0.0
    %253 = vmatpush.msra.mxu0 0.0
    %254 = vmatpush.msra.mxu0 0.0
    %255 = vmatpush.msra.mxu0 0.0
    %256 = vmatpush.msra.mxu0 0.0
    %257 = vmatpush.msra.mxu0 0.0
    %258 = vmatpush.msra.mxu0 0.0
    %259 = vmatpush.msra.mxu0 0.0
    %260 = vmatpush.msra.mxu0 0.0
    %261 = vmatpush.msra.mxu0 0.0
    %262 = vmatpush.msra.mxu0 0.0
    %263 = vmatpush.msra.mxu0 0.0
    %264 = vmatpush.msra.mxu0 %v219
    %265 = vmatpush.msra.mxu0 %v218
    %266 = vmatpush.msra.mxu0 %v217
    %267 = vmatpush.msra.mxu0 %v216
    %268 = vmatmul.f32.gmra.mxu0 %v250
    %v269 = vpop.f32.mrf.mxu0
    %v270 = vadd.f32 %v247, %v269
    %271 = vdwg.mxu0
    %v272 = vld [vmem:[#allocation11] sm:$0x1]
    %v274 = vperm.slane %v272, 0
    %v276 = vadd.f32 %v270, %v274
    %v277 = vld [vmem:[#allocation12] sm:$0x1]
    %v278 = vld [vmem:[#allocation14] sm:$0x1]
    %vm279 = vcmask 523264
    %v280 = vsel %vm279, %v276, 0.0
    %281 = vadd.xlane.f32.xlu0 %v280
    %v282 = vpop.xlane.xlu0 %281
    %v283 = vrcp.pop 64.0
    %v284 = vmul.f32 64.0, %v283
    %v285 = vsub.f32 1.0, %v284
    %v286 = vmul.f32 %v283, %v285
    %v287 = vadd.f32 %v283, %v286
    %vm288 = vweird.f32 %v283
    %v289 = vsel %vm288, %v283, %v287
    %v290 = vmul.f32 %v282, %v289
    %v291 = vsub.f32 %v276, %v290
    %v292 = vmul.f32 %v291, %v291
    %v293 = vsel %vm279, %v292, 0.0
    %294 = vadd.xlane.f32.xlu0 %v293
    %v295 = vpop.xlane.xlu0 %294
    %v296 = vmul.f32 %v295, %v289
    %v297 = vadd.f32 %v296, 1e-05
    %v298 = vrsqrt.pop %v297
    %v299 = vmul.f32 %v298, %v297
    %v300 = vmul.f32 %v299, %v298
    %v301 = vmul.f32 0.5, %v300
    %v302 = vsub.f32 1.5, %v301
    %v303 = vmul.f32 %v298, %v302
    %vm304 = vweird.f32 %v297
    %vm305 = vweird.f32 %v298
    %vm306 = vmor %vm304, %vm305
    %v307 = vsel %vm306, %v298, %v303
    %v308 = vmul.f32 %v291, %v307
    %v310 = vperm.slane %v277, 0
    %v312 = vmul.f32 %v308, %v310
    %v314 = vperm.slane %v278, 0
    %v316 = vadd.f32 %v312, %v314
    %v317 = vmax.f32 %v316, 0.0
    %v318 = vld [vmem:[%s11] sm:$0x1]
    %s319 = sld [smem:[#allocation2]]
    %v320 = vstv %s319
    %v322 = vsel %vm279, %v318, 0
    %v325 = vsel %vm279, %v317, 0
    %327 = vmatpush.xpose.msra.mxu0 0.0
    %328 = vmatpush.xpose.msra.mxu0 0.0
    %329 = vmatpush.xpose.msra.mxu0 0.0
    %330 = vmatpush.xpose.msra.mxu0 0.0
    %331 = vmatpush.xpose.msra.mxu0 0.0
    %332 = vmatpush.xpose.msra.mxu0 0.0
    %333 = vmatpush.xpose.msra.mxu0 0.0
    %334 = vmatpush.xpose.msra.mxu0 0.0
    %335 = vmatpush.xpose.msra.mxu0 0.0
    %336 = vmatpush.xpose.msra.mxu0 0.0
    %337 = vmatpush.xpose.msra.mxu0 0.0
    %338 = vmatpush.xpose.msra.mxu0 0.0
    %339 = vmatpush.xpose.msra.mxu0 0.0
    %340 = vmatpush.xpose.msra.mxu0 0.0
    %341 = vmatpush.xpose.msra.mxu0 0.0
    %342 = vmatpush.xpose.msra.mxu0 %v325
    %343 = vmatmul.f32.gmra.mxu0 %v322
    %v344 = vpop.f32.mrf.mxu0
    %v345 = vadd.f32 %v320, %v344
    %346 = vdwg.mxu0
    %vm347 = vcmask 57344
    %348 = vst.msk [vmem:[#allocation15] sm:$0x1] %vm347, %v345
    // Predicated region
    $region82: #{critic_forward.1} parent=1 // pred_check
      _
    $region83: #{critic_forward.1} parent=1 // pred_check_branch
      %350 = sbr.rel (0) target = $region85
    $region84: #{critic_forward.1} parent=1 // pred_region
      %352 = vsyncadd [#allocation5], 0
      %s354 = sshll.u32 [#allocation15], 4
      %s355 = int_to_ptr.vmem [resolvable:$true] %s354
      %s356 = sshll.u32 %s13, 4
      %s357 = int_to_ptr.hbm [resolvable:$true] %s356
      %359 = dma.vmem_to_hbm [thread:$0]  %s355, 16, %s357, [#allocation5]
    $region85: #{critic_forward.1} parent=1 // pred_fallthru
      _
    // Predicated region
    $region86: #{critic_forward.1} parent=1 // pred_check
      _
    $region87: #{critic_forward.1} parent=1 // pred_check_branch
      %361 = sbr.rel (0) target = $region89
    $region88: #{critic_forward.1} parent=1 // pred_region
      %363 = dma.done [#allocation5], 16
    $region89: #{critic_forward.1} parent=1 // pred_fallthru
      _
    %364 = vsyncpa [#allocation4], 1
    %365 = vsyncpa [#allocation7], 1
    %366 = vsyncpa [#allocation10], 1
    %367 = vsyncpa [#allocation13], 1
    %368 = vsyncpa [#allocation5], 1

</llo_original>
